<compile_context>
chip_gen: v7x
topology: tpu7x:2x2x1
jax: 0.10.0
libtpu: 0.0.40
codegen_flags: <defaults>
</compile_context>

<pallas_src>
import functools

import jax
import jax.numpy as jnp
from jax import lax
from jax.experimental import pallas as pl
from jax.experimental.pallas import tpu as pltpu

_MiB = 1024 * 1024


# ---------------------------------------------------------------------------
# Kernel bodies
# ---------------------------------------------------------------------------
def _attention_core(x1, hproj, enc_f32, lens, w2c, out_ref, attn_ref, attn_transposed):
    """x1 = l1(hidden), hproj = hidden @ w2[D:], enc_f32 = (BB,S,D) f32 tile."""
    BB, S, D = enc_f32.shape

    # att[b, s] = sum_d enc[b, s, d] * x1[b, d]
    # VPU multiply + lane reduction (no M=1 batched MXU matmuls on the critical path).
    att = jnp.sum(enc_f32 * x1[:, None, :], axis=-1)                    # (BB, S)

    # sequence_mask(src_lens): seq_range < src_len
    seq_ids = lax.broadcasted_iota(jnp.int32, (BB, S), 1)
    mask = (seq_ids < lens).astype(jnp.float32)                         # lens: (BB, 1)

    # masked_att = seq_mask * att_score; masked_att[masked_att == 0] = -1e10
    # (exact-zero replacement, including true zeros of att_score, as in torch)
    masked = mask * att
    masked = jnp.where(masked == 0.0, jnp.float32(-1e10), masked)

    # softmax over the sequence axis (EUP exp + approximate reciprocal)
    m = jnp.max(masked, axis=-1, keepdims=True)
    e = jnp.exp(masked - m)
    p = e * pl.reciprocal(jnp.sum(e, axis=-1, keepdims=True), approx=True)  # (BB, S)

    # ctx[b, d] = sum_s p[b, s] * enc[b, s, d]  — VPU multiply + sublane reduction
    ctx = jnp.sum(p[:, :, None] * enc_f32, axis=1)                      # (BB, D)

    # out = tanh(cat(ctx, hidden) @ w2) == tanh(ctx @ w2[:D] + hidden @ w2[D:])
    out_ref[...] = jnp.tanh(
        jnp.dot(ctx, w2c, preferred_element_type=jnp.float32) + hproj)

    if attn_transposed:
        attn_ref[...] = p.T          # (S, BB): lane-dense store (BB % 128 == 0)
    else:
        attn_ref[...] = p            # (BB, S): lane-dense along full S


def _attention_kernel_fused(hidden_ref, enc_ref, lens_ref, whid_ref, w2c_ref,
                            out_ref, attn_ref, *, d, attn_transposed):
    # Single (BB,H) x (H,2D) MXU call; lane-aligned slice requires d % 128 == 0.
    hidden = hidden_ref[...]
    hh = jnp.dot(hidden, whid_ref[...], preferred_element_type=jnp.float32)  # (BB, 2D)
    x1, hproj = hh[:, :d], hh[:, d:]
    enc_f32 = enc_ref[...].astype(jnp.float32)
    _attention_core(x1, hproj, enc_f32, lens_ref[...], w2c_ref[...],
                    out_ref, attn_ref, attn_transposed)


def _attention_kernel_split(hidden_ref, enc_ref, lens_ref, w1_ref, w2c_ref, w2h_ref,
                            out_ref, attn_ref, *, attn_transposed):
    hidden = hidden_ref[...]
    x1 = jnp.dot(hidden, w1_ref[...], preferred_element_type=jnp.float32)
    hproj = jnp.dot(hidden, w2h_ref[...], preferred_element_type=jnp.float32)
    enc_f32 = enc_ref[...].astype(jnp.float32)
    _attention_core(x1, hproj, enc_f32, lens_ref[...], w2c_ref[...],
                    out_ref, attn_ref, attn_transposed)


# ---------------------------------------------------------------------------
# Tiling / VMEM-budget heuristics
# ---------------------------------------------------------------------------
def _vmem_budget_bytes():
    """Generation-aware (tiles + weights) VMEM budget and physical capacity."""
    try:
        cap = int(pltpu.get_tpu_info().vmem_capacity_bytes)
    except Exception:                      # conservative fallback (v7x-sized VMEM)
        cap = 64 * _MiB
    if cap <= 64 * _MiB:                   # v7x: 64 MiB physical -> ~44 MiB of tiles
        budget = cap - 20 * _MiB
    else:                                  # v5e / v6e: 128 MiB physical -> ~98 MiB of tiles
        budget = cap - 30 * _MiB
    return budget, cap


def _choose_block_b(B, S, D, H, enc_itemsize):
    """Largest batch tile BB that fits the budget, with >=2 grid steps when B > 8."""
    budget, cap = _vmem_budget_bytes()

    # Resident weights: w_hid (H, 2D) (or w1 + w2_hid) and w2_ctx (D, D), double-buffered.
    weight_bytes = 2 * (2 * H * D + D * D) * 4
    per_row = (
        2 * S * D * enc_itemsize                    # encoder tile (dominant, double-buffered)
        + 2 * (H + D + S + 128) * 4                 # hidden/out/attn tiles + padded lens block
        + (2 * S * D + 6 * S + 4 * D + 2 * H) * 4   # in-kernel f32 temporaries (upcast + product)
    )
    avail = budget - weight_bytes
    bb = max(avail // per_row, 0)

    if B > 8:
        # Force at least 2 grid steps: shards the "parallel" batch axis across v7x's two
        # TensorCores and enables DMA/compute overlap on all generations.
        bb = min(bb, ((pl.cdiv(B, 2) + 7) // 8) * 8)

    if bb >= B:
        BB = B
    elif bb >= 128:
        BB = (bb // 128) * 128          # 128-aligned -> lane-dense in-kernel attn transpose
    elif bb >= 8:
        BB = (bb // 8) * 8
    else:
        BB = min(B, 8)                  # minimum alignable tile; feasibility checked below

    required = weight_bytes + BB * per_row
    if required > cap - 8 * _MiB:
        # TODO(synk): tile the sequence axis (online softmax) when a single 8-row batch
        # tile of encoder_outs no longer fits in VMEM.
        raise ValueError(
            f"Attention tile (BB={BB}, S={S}, D={D}) needs ~{required / _MiB:.1f} MiB VMEM, "
            f"exceeding the ~{cap / _MiB:.0f} MiB available on this TPU generation.")

    vmem_limit = int(min(cap - 4 * _MiB, max(budget, required) + 12 * _MiB))
    return BB, vmem_limit


# ---------------------------------------------------------------------------
# Public wrapper
# ---------------------------------------------------------------------------
def attention_module(hidden, encoder_outs, src_lens, w1, w2, *, stream_dtype=jnp.bfloat16):
    B, S, D = encoder_outs.shape
    H = hidden.shape[1]
    lens2d = src_lens.astype(jnp.int32).reshape(B, 1)
    w2_ctx = w2[:D]                     # (D, D) — applied to the attention context
    w2_hid = w2[D:]                     # (H, D) — applied to hidden

    enc_stream = encoder_outs.astype(stream_dtype)   # bf16 halves the dominant HBM stream
    BB, vmem_limit = _choose_block_b(B, S, D, H, jnp.dtype(stream_dtype).itemsize)
    grid = (pl.cdiv(B, BB),)

    attn_transposed = (BB % 128 == 0)   # in-kernel (S, BB) store only when lane-dense
    fuse_hidden = (D % 128 == 0)        # fused hidden matmul only when the slice is lane-aligned

    if fuse_hidden:
        w_hid = jnp.concatenate([w1, w2_hid], axis=1)            # (H, 2D)
        kernel = functools.partial(_attention_kernel_fused, d=D,
                                   attn_transposed=attn_transposed)
        weight_specs = [pl.BlockSpec((H, 2 * D), lambda i: (0, 0)),   # VMEM-resident
                        pl.BlockSpec((D, D), lambda i: (0, 0))]
        weights = (w_hid, w2_ctx)
    else:
        kernel = functools.partial(_attention_kernel_split,
                                   attn_transposed=attn_transposed)
        weight_specs = [pl.BlockSpec((H, D), lambda i: (0, 0)),
                        pl.BlockSpec((D, D), lambda i: (0, 0)),
                        pl.BlockSpec((H, D), lambda i: (0, 0))]
        weights = (w1, w2_ctx, w2_hid)

    if attn_transposed:
        attn_shape = (S, B)
        attn_spec = pl.BlockSpec((S, BB), lambda i: (0, i))
    else:
        attn_shape = (B, S)
        attn_spec = pl.BlockSpec((BB, S), lambda i: (i, 0))

    out, attn = pl.pallas_call(
        kernel,
        out_shape=(jax.ShapeDtypeStruct((B, D), jnp.float32),
                   jax.ShapeDtypeStruct(attn_shape, jnp.float32)),
        grid_spec=pltpu.PrefetchScalarGridSpec(
            num_scalar_prefetch=0,
            grid=grid,
            in_specs=[
                pl.BlockSpec((BB, H), lambda i: (i, 0)),         # hidden tile
                pl.BlockSpec((BB, S, D), lambda i: (i, 0, 0)),   # encoder tile (dominant stream)
                pl.BlockSpec((BB, 1), lambda i: (i, 0)),         # lengths
                *weight_specs,
            ],
            out_specs=(
                pl.BlockSpec((BB, D), lambda i: (i, 0)),         # out
                attn_spec,                                       # attn (lane-dense)
            ),
        ),
        compiler_params=pltpu.CompilerParams(
            dimension_semantics=("parallel",),                   # batch tiles are independent
            vmem_limit_bytes=vmem_limit,
        ),
    )(hidden, enc_stream, lens2d, *weights)

    if not attn_transposed:
        attn = attn.T                   # torch returns attn_scores as (sq_len, bsz)
    return out, attn


# ---------------------------------------------------------------------------
# Self-test
# ---------------------------------------------------------------------------
if __name__ == "__main__":
    B, S = 2, 8
    hidden_dim, output_dim = 32, 32

    key = jax.random.PRNGKey(0)
    k_h, k_e, k_w1, k_w2 = jax.random.split(key, 4)

    hidden = jax.random.normal(k_h, (B, hidden_dim), dtype=jnp.float32)
    encoder_outs = jax.random.normal(k_e, (B, S, output_dim), dtype=jnp.float32)
    src_lens = jnp.array([S, 5], dtype=jnp.int32)   # max == sq_len, matching torch usage

    # deterministic uniform(-0.1, 0.1) init, as in the torch Linear() helper
    w1 = jax.random.uniform(k_w1, (hidden_dim, output_dim),
                            minval=-0.1, maxval=0.1, dtype=jnp.float32)
    w2 = jax.random.uniform(k_w2, (output_dim + hidden_dim, output_dim),
                            minval=-0.1, maxval=0.1, dtype=jnp.float32)

    # plain-JAX reference mirroring the torch forward
    def reference(hidden, enc, lens, w1, w2):
        x1 = hidden @ w1
        att = jnp.einsum('bsd,bd->bs', enc, x1)
        mask = (jnp.arange(enc.shape[1])[None, :] < lens[:, None]).astype(jnp.float32)
        masked = mask * att
        masked = jnp.where(masked == 0.0, -1e10, masked)
        p = jax.nn.softmax(masked, axis=1)
        ctx = jnp.einsum('bs,bsd->bd', p, enc)
        o = jnp.tanh(jnp.concatenate([ctx, hidden], axis=1) @ w2)
        return o, p.T

    o_ref, p_ref = reference(hidden, encoder_outs, src_lens, w1, w2)

    # default path: bf16-streamed encoder (bandwidth-optimized)
    out, attn = jax.jit(attention_module)(hidden, encoder_outs, src_lens, w1, w2)
    # exact-dtype path: f32 encoder stream
    out32, attn32 = jax.jit(
        functools.partial(attention_module, stream_dtype=jnp.float32)
    )(hidden, encoder_outs, src_lens, w1, w2)
    jax.block_until_ready((out, attn, out32, attn32))

    assert out.shape == (B, output_dim)
    assert attn.shape == (S, B)
    assert jnp.allclose(out32, o_ref, rtol=1e-2, atol=1e-2)
    assert jnp.allclose(attn32, p_ref, rtol=1e-2, atol=1e-2)
    assert jnp.allclose(out, o_ref, rtol=3e-2, atol=3e-2)
    assert jnp.allclose(attn, p_ref, rtol=3e-2, atol=3e-2)
    assert jnp.allclose(jnp.sum(attn, axis=0), 1.0, atol=1e-2)

    print("KERNEL_OK")
</pallas_src>

<mosaic_0001>
module attributes {stable_mosaic.version = 11 : i64} {
  func.func @_attention_kernel_split(%arg0: i32, %arg1: memref<2x32xf32, #tpu.memory_space<vmem>>, %arg2: memref<2x8x32xbf16, #tpu.memory_space<vmem>>, %arg3: memref<2x1xi32, #tpu.memory_space<vmem>>, %arg4: memref<32x32xf32, #tpu.memory_space<vmem>>, %arg5: memref<32x32xf32, #tpu.memory_space<vmem>>, %arg6: memref<32x32xf32, #tpu.memory_space<vmem>>, %arg7: memref<2x32xf32, #tpu.memory_space<vmem>>, %arg8: memref<2x8xf32, #tpu.memory_space<vmem>>) attributes {dimension_semantics = [#tpu.dimension_semantics<parallel>], iteration_bounds = array<i64: 1>, scalar_prefetch = 0 : i64, scratch_operands = 0 : i64, tpu.core_type = #tpu.core_type<tc>, window_params = [{transform_indices = @transform_0, window_bounds = array<i64: 2, 32>}, {transform_indices = @transform_1, window_bounds = array<i64: 2, 8, 32>}, {transform_indices = @transform_2, window_bounds = array<i64: 2, 1>}, {pipeline_mode = #tpu.pipeline_mode<synchronous>, transform_indices = @transform_3, window_bounds = array<i64: 32, 32>}, {pipeline_mode = #tpu.pipeline_mode<synchronous>, transform_indices = @transform_4, window_bounds = array<i64: 32, 32>}, {pipeline_mode = #tpu.pipeline_mode<synchronous>, transform_indices = @transform_5, window_bounds = array<i64: 32, 32>}, {transform_indices = @transform_6, window_bounds = array<i64: 2, 32>}, {transform_indices = @transform_7, window_bounds = array<i64: 2, 8>}]} {
    %c0 = arith.constant 0 : index
    %c0_0 = arith.constant 0 : index
    %0 = vector.load %arg1[%c0, %c0_0] : memref<2x32xf32, #tpu.memory_space<vmem>>, vector<2x32xf32>
    %c0_1 = arith.constant 0 : index
    %c0_2 = arith.constant 0 : index
    %1 = vector.load %arg4[%c0_1, %c0_2] : memref<32x32xf32, #tpu.memory_space<vmem>>, vector<32x32xf32>
    %cst = arith.constant dense<0.000000e+00> : vector<2x32xf32>
    %2 = tpu.matmul %0, %1, %cst {dimension_numbers = #tpu.dot_dimension_numbers<[1], [0], [0], [1], [0, 0, 1, 1], [], []>} : vector<2x32xf32>, vector<32x32xf32>, vector<2x32xf32> -> vector<2x32xf32>
    %c0_3 = arith.constant 0 : index
    %c0_4 = arith.constant 0 : index
    %3 = vector.load %arg6[%c0_3, %c0_4] : memref<32x32xf32, #tpu.memory_space<vmem>>, vector<32x32xf32>
    %cst_5 = arith.constant dense<0.000000e+00> : vector<2x32xf32>
    %4 = tpu.matmul %0, %3, %cst_5 {dimension_numbers = #tpu.dot_dimension_numbers<[1], [0], [0], [1], [0, 0, 1, 1], [], []>} : vector<2x32xf32>, vector<32x32xf32>, vector<2x32xf32> -> vector<2x32xf32>
    %c0_6 = arith.constant 0 : index
    %c0_7 = arith.constant 0 : index
    %c0_8 = arith.constant 0 : index
    %5 = vector.load %arg2[%c0_6, %c0_7, %c0_8] : memref<2x8x32xbf16, #tpu.memory_space<vmem>>, vector<2x8x32xbf16>
    %6 = arith.extf %5 : vector<2x8x32xbf16> to vector<2x8x32xf32>
    %c0_9 = arith.constant 0 : index
    %c0_10 = arith.constant 0 : index
    %7 = vector.load %arg3[%c0_9, %c0_10] : memref<2x1xi32, #tpu.memory_space<vmem>>, vector<2x1xi32>
    %c0_11 = arith.constant 0 : index
    %c0_12 = arith.constant 0 : index
    %8 = vector.load %arg5[%c0_11, %c0_12] : memref<32x32xf32, #tpu.memory_space<vmem>>, vector<32x32xf32>
    %9 = vector.shape_cast %2 : vector<2x32xf32> to vector<2x1x32xf32>
    %10 = vector.broadcast %9 : vector<2x1x32xf32> to vector<2x8x32xf32>
    %11 = arith.mulf %6, %10 : vector<2x8x32xf32>
    %cst_13 = arith.constant dense<0.000000e+00> : vector<2x8xf32>
    %12 = vector.multi_reduction <add>, %11, %cst_13 [2] : vector<2x8x32xf32> to vector<2x8xf32>
    %13 = tpu.iota {dimensions = array<i32: 1>} : vector<2x8xi32>
    %14 = vector.broadcast %7 : vector<2x1xi32> to vector<2x8xi32>
    %15 = arith.cmpi slt, %13, %14 : vector<2x8xi32>
    %16 = arith.extui %15 : vector<2x8xi1> to vector<2x8xi32>
    %17 = arith.sitofp %16 : vector<2x8xi32> to vector<2x8xf32>
    %18 = arith.mulf %17, %12 : vector<2x8xf32>
    %cst_14 = arith.constant 0.000000e+00 : f32
    %19 = vector.broadcast %cst_14 : f32 to vector<2x8xf32>
    %20 = arith.cmpf oeq, %18, %19 : vector<2x8xf32>
    %cst_15 = arith.constant -1.000000e+10 : f32
    %21 = vector.broadcast %cst_15 : f32 to vector<2x8xf32>
    %22 = arith.select %20, %21, %18 : vector<2x8xi1>, vector<2x8xf32>
    %cst_16 = arith.constant dense<0xFF800000> : vector<2xf32>
    %23 = vector.multi_reduction <maximumf>, %22, %cst_16 [1] : vector<2x8xf32> to vector<2xf32>
    %24 = vector.shape_cast %23 : vector<2xf32> to vector<2x1xf32>
    %25 = vector.broadcast %24 : vector<2x1xf32> to vector<2x8xf32>
    %26 = arith.subf %22, %25 : vector<2x8xf32>
    %27 = math.exp %26 : vector<2x8xf32>
    %cst_17 = arith.constant dense<0.000000e+00> : vector<2xf32>
    %28 = vector.multi_reduction <add>, %27, %cst_17 [1] : vector<2x8xf32> to vector<2xf32>
    %29 = vector.shape_cast %28 : vector<2xf32> to vector<2x1xf32>
    %30 = tpu.reciprocal %29 {approx = true} : vector<2x1xf32> -> vector<2x1xf32>
    %31 = vector.broadcast %30 : vector<2x1xf32> to vector<2x8xf32>
    %32 = arith.mulf %27, %31 : vector<2x8xf32>
    %33 = vector.shape_cast %32 : vector<2x8xf32> to vector<2x8x1xf32>
    %34 = vector.broadcast %33 : vector<2x8x1xf32> to vector<2x8x32xf32>
    %35 = arith.mulf %34, %6 : vector<2x8x32xf32>
    %cst_18 = arith.constant dense<0.000000e+00> : vector<2x32xf32>
    %36 = vector.multi_reduction <add>, %35, %cst_18 [1] : vector<2x8x32xf32> to vector<2x32xf32>
    %cst_19 = arith.constant dense<0.000000e+00> : vector<2x32xf32>
    %37 = tpu.matmul %36, %8, %cst_19 {dimension_numbers = #tpu.dot_dimension_numbers<[1], [0], [0], [1], [0, 0, 1, 1], [], []>} : vector<2x32xf32>, vector<32x32xf32>, vector<2x32xf32> -> vector<2x32xf32>
    %38 = arith.addf %37, %4 : vector<2x32xf32>
    %39 = math.tanh %38 : vector<2x32xf32>
    %c0_20 = arith.constant 0 : index
    %c0_21 = arith.constant 0 : index
    %40 = vector.load %arg7[%c0_20, %c0_21] : memref<2x32xf32, #tpu.memory_space<vmem>>, vector<2x32xf32>
    tpu.vector_store %arg7[%c0_20, %c0_21], %39 {strides = array<i32>} : memref<2x32xf32, #tpu.memory_space<vmem>>, vector<2x32xf32>,
    %c0_22 = arith.constant 0 : index
    %c0_23 = arith.constant 0 : index
    %41 = vector.load %arg8[%c0_22, %c0_23] : memref<2x8xf32, #tpu.memory_space<vmem>>, vector<2x8xf32>
    tpu.vector_store %arg8[%c0_22, %c0_23], %32 {strides = array<i32>} : memref<2x8xf32, #tpu.memory_space<vmem>>, vector<2x8xf32>,
    return
  }
  func.func @transform_0(%arg0: i32) -> (i32, i32) {
    %c0_i32 = arith.constant 0 : i32
    %c0_i32_0 = arith.constant 0 : i32
    return %arg0, %c0_i32 : i32, i32
  }
  func.func @transform_1(%arg0: i32) -> (i32, i32, i32) {
    %c0_i32 = arith.constant 0 : i32
    %c0_i32_0 = arith.constant 0 : i32
    %c0_i32_1 = arith.constant 0 : i32
    return %arg0, %c0_i32, %c0_i32_0 : i32, i32, i32
  }
  func.func @transform_2(%arg0: i32) -> (i32, i32) {
    %c0_i32 = arith.constant 0 : i32
    %c0_i32_0 = arith.constant 0 : i32
    return %arg0, %c0_i32 : i32, i32
  }
  func.func @transform_3(%arg0: i32) -> (i32, i32) {
    %c0_i32 = arith.constant 0 : i32
    %c0_i32_0 = arith.constant 0 : i32
    %c0_i32_1 = arith.constant 0 : i32
    return %c0_i32, %c0_i32_0 : i32, i32
  }
  func.func @transform_4(%arg0: i32) -> (i32, i32) {
    %c0_i32 = arith.constant 0 : i32
    %c0_i32_0 = arith.constant 0 : i32
    %c0_i32_1 = arith.constant 0 : i32
    return %c0_i32, %c0_i32_0 : i32, i32
  }
  func.func @transform_5(%arg0: i32) -> (i32, i32) {
    %c0_i32 = arith.constant 0 : i32
    %c0_i32_0 = arith.constant 0 : i32
    %c0_i32_1 = arith.constant 0 : i32
    return %c0_i32, %c0_i32_0 : i32, i32
  }
  func.func @transform_6(%arg0: i32) -> (i32, i32) {
    %c0_i32 = arith.constant 0 : i32
    %c0_i32_0 = arith.constant 0 : i32
    return %arg0, %c0_i32 : i32, i32
  }
  func.func @transform_7(%arg0: i32) -> (i32, i32) {
    %c0_i32 = arith.constant 0 : i32
    %c0_i32_0 = arith.constant 0 : i32
    return %arg0, %c0_i32 : i32, i32
  }
}

</mosaic_0001>

<llo_original>
// kernel: attention_module.1
$region0: #{attention_module.1}
  #allocation0 [shape = 'u32[]', space=smem, size = 0x4, offset = 0x4, fixed_abs, tag = 'smem constant byte address 0x4 - core index']
  #allocation1 [shape = 'u32[144,128]{1,0:T(1,128)}', space=vmem, size = 0x12000, scoped, tag = 'internal scratch']
  %s0 = inlined_call_operand.vmem [shape: f32[2,32], index: 0, kind: input, shape index: {}]
  %s1 = inlined_call_operand.vmem [shape: bf16[2,8,32], index: 1, kind: input, shape index: {}]
  %s2 = inlined_call_operand.vmem [shape: s32[2,1], index: 2, kind: input, shape index: {}]
  %s3 = inlined_call_operand.vmem [shape: f32[32,32], index: 3, kind: input, shape index: {}]
  %s4 = inlined_call_operand.vmem [shape: f32[32,32], index: 4, kind: input, shape index: {}]
  %s5 = inlined_call_operand.vmem [shape: f32[32,32], index: 5, kind: input, shape index: {}]
  %s6 = inlined_call_operand.hbm [shape: f32[2,32], index: 6, kind: output, shape index: {0}]
  %s7 = inlined_call_operand.hbm [shape: f32[2,8], index: 7, kind: output, shape index: {1}]
  %8 = xla_tuple %s6, %s7
  %s9 = sld [smem:[#allocation0]]
  $region42: #{attention_module.1} parent=0
    _
  %s11 = ssub.s32 1, %s9
  %s12 = scalar_select 0, %s11, %s9
  $region1: #{attention_module.1} parent=0
    #allocation2 [shape = 'u8[1024]{0}', space=vmem, size = 0x400, scoped, tag = 'output window, operand 0, single buffered']
    #allocation3 [shape = 's32[1]{0}', space=sflag, size = 0x4, scoped, tag = 'scoped memory for attention_module.1']
    #allocation4 [shape = 'u8[1024]{0}', space=vmem, size = 0x400, scoped, tag = 'output window, operand 1, single buffered']
    #allocation5 [shape = 's32[1]{0}', space=sflag, size = 0x4, scoped, tag = 'scoped memory for attention_module.1']
    %13 = vsyncpa [#allocation3], 0
    %14 = vsyncpa [#allocation5], 0
    // Predicated region
    $region2: #{attention_module.1} parent=1 // pred_check
      _
    $region3: #{attention_module.1} parent=1 // pred_check_branch
      %16 = sbr.rel (0) target = $region5
    $region4: #{attention_module.1} parent=1 // pred_region
      _
    $region5: #{attention_module.1} parent=1 // pred_fallthru
      _
    // Predicated region
    $region6: #{attention_module.1} parent=1 // pred_check
      _
    $region7: #{attention_module.1} parent=1 // pred_check_branch
      %18 = sbr.rel (0) target = $region9
    $region8: #{attention_module.1} parent=1 // pred_region
      _
    $region9: #{attention_module.1} parent=1 // pred_fallthru
      _
    // Predicated region
    $region10: #{attention_module.1} parent=1 // pred_check
      _
    $region11: #{attention_module.1} parent=1 // pred_check_branch
      %20 = sbr.rel (0) target = $region13
    $region12: #{attention_module.1} parent=1 // pred_region
      _
    $region13: #{attention_module.1} parent=1 // pred_fallthru
      _
    // Predicated region
    $region14: #{attention_module.1} parent=1 // pred_check
      _
    $region15: #{attention_module.1} parent=1 // pred_check_branch
      %22 = sbr.rel (0) target = $region17
    $region16: #{attention_module.1} parent=1 // pred_region
      _
    $region17: #{attention_module.1} parent=1 // pred_fallthru
      _
    // Predicated region
    $region18: #{attention_module.1} parent=1 // pred_check
      _
    $region19: #{attention_module.1} parent=1 // pred_check_branch
      %24 = sbr.rel (0) target = $region21
    $region20: #{attention_module.1} parent=1 // pred_region
      _
    $region21: #{attention_module.1} parent=1 // pred_fallthru
      _
    // Predicated region
    $region22: #{attention_module.1} parent=1 // pred_check
      _
    $region23: #{attention_module.1} parent=1 // pred_check_branch
      %26 = sbr.rel (0) target = $region25
    $region24: #{attention_module.1} parent=1 // pred_region
      _
    $region25: #{attention_module.1} parent=1 // pred_fallthru
      _
    %v27 = vld [vmem:[%s0] sm:$0x3]
    %v28 = vld [vmem:[%s3] sm:$0xff]
    %v29 = vld [vmem:[%s3 + $0x8] sm:$0xff]
    %v30 = vld [vmem:[%s3 + $0x10] sm:$0xff]
    %v31 = vld [vmem:[%s3 + $0x18] sm:$0xff]
    %vm32 = vcmask 261120
    %v34 = vsel %vm32, %v27, 0
    %36 = vmatprep.subr.mxu0 0.0
    %37 = vmatpush1.msra.mxu0 %v28
    %38 = vmatprep.subr.mxu0 0.0
    %39 = vmatpush1.msra.mxu0 %v29
    %40 = vmatprep.subr.mxu0 0.0
    %41 = vmatpush1.msra.mxu0 %v30
    %42 = vmatprep.subr.mxu0 0.0
    %43 = vmatpush1.msra.mxu0 %v31
    %44 = vmatprep.subr.mxu0 0.0
    %45 = vmatpush1.msra.mxu0 0.0
    %46 = vmatprep.subr.mxu0 0.0
    %47 = vmatpush1.msra.mxu0 0.0
    %48 = vmatprep.subr.mxu0 0.0
    %49 = vmatpush1.msra.mxu0 0.0
    %50 = vmatprep.subr.mxu0 0.0
    %51 = vmatpush1.msra.mxu0 0.0
    %52 = vmatprep.subr.mxu0 0.0
    %53 = vmatpush1.msra.mxu0 0.0
    %54 = vmatprep.subr.mxu0 0.0
    %55 = vmatpush1.msra.mxu0 0.0
    %56 = vmatprep.subr.mxu0 0.0
    %57 = vmatpush1.msra.mxu0 0.0
    %58 = vmatprep.subr.mxu0 0.0
    %59 = vmatpush1.msra.mxu0 0.0
    %60 = vmatprep.subr.mxu0 0.0
    %61 = vmatpush1.msra.mxu0 0.0
    %62 = vmatprep.subr.mxu0 0.0
    %63 = vmatpush1.msra.mxu0 0.0
    %64 = vmatprep.subr.mxu0 0.0
    %65 = vmatpush1.msra.mxu0 0.0
    %66 = vmatprep.subr.mxu0 0.0
    %67 = vmatpush1.msra.mxu0 0.0
    %68 = vmatprep.subr.mxu0 0.0
    %69 = vmatpush1.msra.mxu0 0.0
    %70 = vmatprep.subr.mxu0 0.0
    %71 = vmatpush1.msra.mxu0 0.0
    %72 = vmatprep.subr.mxu0 0.0
    %73 = vmatpush1.msra.mxu0 0.0
    %74 = vmatprep.subr.mxu0 0.0
    %75 = vmatpush1.msra.mxu0 0.0
    %76 = vmatprep.subr.mxu0 0.0
    %77 = vmatpush1.msra.mxu0 0.0
    %78 = vmatprep.subr.mxu0 0.0
    %79 = vmatpush1.msra.mxu0 0.0
    %80 = vmatprep.subr.mxu0 0.0
    %81 = vmatpush1.msra.mxu0 0.0
    %82 = vmatprep.subr.mxu0 0.0
    %83 = vmatpush1.msra.mxu0 0.0
    %84 = vmatprep.subr.mxu0 0.0
    %85 = vmatpush1.msra.mxu0 0.0
    %86 = vmatprep.subr.mxu0 0.0
    %87 = vmatpush1.msra.mxu0 0.0
    %88 = vmatprep.subr.mxu0 0.0
    %89 = vmatpush1.msra.mxu0 0.0
    %90 = vmatprep.subr.mxu0 0.0
    %91 = vmatpush1.msra.mxu0 0.0
    %92 = vmatprep.subr.mxu0 0.0
    %93 = vmatpush1.msra.mxu0 0.0
    %94 = vmatprep.subr.mxu0 0.0
    %95 = vmatpush1.msra.mxu0 0.0
    %96 = vmatprep.subr.mxu0 0.0
    %97 = vmatpush1.msra.mxu0 0.0
    %98 = vmatprep.subr.mxu0 0.0
    %99 = vmatpush1.msra.mxu0 0.0
    %100 = vmatprep.mubr.f32.mxu0 0.0
    %101 = vmatmul.mubr.f32.gmra.mrb[0].mxu0 %v34
    %v102 = vpop.f32.mrb[0].mxu0
    %v103 = vadd.f32 0.0, %v102
    %v104 = vpop.f32.mrb[0].mxu0
    %105 = vdwg.mxu0
    %v106 = vld [vmem:[%s5] sm:$0xff]
    %v107 = vld [vmem:[%s5 + $0x8] sm:$0xff]
    %v108 = vld [vmem:[%s5 + $0x10] sm:$0xff]
    %v109 = vld [vmem:[%s5 + $0x18] sm:$0xff]
    %110 = vmatprep.subr.mxu0 0.0
    %111 = vmatpush1.msra.mxu0 %v106
    %112 = vmatprep.subr.mxu0 0.0
    %113 = vmatpush1.msra.mxu0 %v107
    %114 = vmatprep.subr.mxu0 0.0
    %115 = vmatpush1.msra.mxu0 %v108
    %116 = vmatprep.subr.mxu0 0.0
    %117 = vmatpush1.msra.mxu0 %v109
    %118 = vmatprep.subr.mxu0 0.0
    %119 = vmatpush1.msra.mxu0 0.0
    %120 = vmatprep.subr.mxu0 0.0
    %121 = vmatpush1.msra.mxu0 0.0
    %122 = vmatprep.subr.mxu0 0.0
    %123 = vmatpush1.msra.mxu0 0.0
    %124 = vmatprep.subr.mxu0 0.0
    %125 = vmatpush1.msra.mxu0 0.0
    %126 = vmatprep.subr.mxu0 0.0
    %127 = vmatpush1.msra.mxu0 0.0
    %128 = vmatprep.subr.mxu0 0.0
    %129 = vmatpush1.msra.mxu0 0.0
    %130 = vmatprep.subr.mxu0 0.0
    %131 = vmatpush1.msra.mxu0 0.0
    %132 = vmatprep.subr.mxu0 0.0
    %133 = vmatpush1.msra.mxu0 0.0
    %134 = vmatprep.subr.mxu0 0.0
    %135 = vmatpush1.msra.mxu0 0.0
    %136 = vmatprep.subr.mxu0 0.0
    %137 = vmatpush1.msra.mxu0 0.0
    %138 = vmatprep.subr.mxu0 0.0
    %139 = vmatpush1.msra.mxu0 0.0
    %140 = vmatprep.subr.mxu0 0.0
    %141 = vmatpush1.msra.mxu0 0.0
    %142 = vmatprep.subr.mxu0 0.0
    %143 = vmatpush1.msra.mxu0 0.0
    %144 = vmatprep.subr.mxu0 0.0
    %145 = vmatpush1.msra.mxu0 0.0
    %146 = vmatprep.subr.mxu0 0.0
    %147 = vmatpush1.msra.mxu0 0.0
    %148 = vmatprep.subr.mxu0 0.0
    %149 = vmatpush1.msra.mxu0 0.0
    %150 = vmatprep.subr.mxu0 0.0
    %151 = vmatpush1.msra.mxu0 0.0
    %152 = vmatprep.subr.mxu0 0.0
    %153 = vmatpush1.msra.mxu0 0.0
    %154 = vmatprep.subr.mxu0 0.0
    %155 = vmatpush1.msra.mxu0 0.0
    %156 = vmatprep.subr.mxu0 0.0
    %157 = vmatpush1.msra.mxu0 0.0
    %158 = vmatprep.subr.mxu0 0.0
    %159 = vmatpush1.msra.mxu0 0.0
    %160 = vmatprep.subr.mxu0 0.0
    %161 = vmatpush1.msra.mxu0 0.0
    %162 = vmatprep.subr.mxu0 0.0
    %163 = vmatpush1.msra.mxu0 0.0
    %164 = vmatprep.subr.mxu0 0.0
    %165 = vmatpush1.msra.mxu0 0.0
    %166 = vmatprep.subr.mxu0 0.0
    %167 = vmatpush1.msra.mxu0 0.0
    %168 = vmatprep.subr.mxu0 0.0
    %169 = vmatpush1.msra.mxu0 0.0
    %170 = vmatprep.subr.mxu0 0.0
    %171 = vmatpush1.msra.mxu0 0.0
    %172 = vmatprep.subr.mxu0 0.0
    %173 = vmatpush1.msra.mxu0 0.0
    %174 = vmatprep.mubr.f32.mxu0 0.0
    %175 = vmatmul.mubr.f32.gmra.mrb[0].mxu0 %v34
    %v176 = vpop.f32.mrb[0].mxu0
    %v177 = vadd.f32 0.0, %v176
    %v178 = vpop.f32.mrb[0].mxu0
    %179 = vdwg.mxu0
    %v180 = vld [vmem:[%s1] sm:$0xf]
    %v181 = vld [vmem:[%s1 + $0x4] sm:$0xf]
    %v182 = vunpack.c.l.bf16 %v180
    %v183 = vunpack.c.l.bf16 %v181
    %v184 = vld [vmem:[%s2] sm:$0x3]
    %v185 = vld [vmem:[%s4] sm:$0xff]
    %v186 = vld [vmem:[%s4 + $0x8] sm:$0xff]
    %v187 = vld [vmem:[%s4 + $0x10] sm:$0xff]
    %v188 = vld [vmem:[%s4 + $0x18] sm:$0xff]
    %v191 = vunpack.c.l.s4 1966171168
    %v192 = vunpack.c.0.s8 %v191
    %v193 = vlaneseq
    %v194 = vshrl.u32 %v193, 7
    %v195 = vsub.s32 %v192, %v194
    %v196 = vrot.slane %v103, %v195
    %v197 = vcombine.high %v196, %v196
    %v199 = vunpack.c.l.s4 1966171168
    %v200 = vunpack.c.0.s8 %v199
    %v201 = vlaneseq
    %v202 = vshrl.u32 %v201, 7
    %v203 = vsub.s32 %v200, %v202
    %v204 = vrot.slane %v196, %v203
    %v206 = vunpack.c.l.s4 1966171168
    %v207 = vunpack.c.0.s8 %v206
    %v208 = vlaneseq
    %v209 = vshrl.u32 %v208, 7
    %v210 = vsub.s32 %v207, %v209
    %v211 = vrot.slane %v197, %v210
    %v212 = vlaneseq
    %v213 = vshrl.u32 %v212, 7
    %v214 = vsub.s32 0, %v213
    %v215 = vrot.slane %v204, %v214
    %v216 = vlaneseq
    %v217 = vshrl.u32 %v216, 7
    %v218 = vsub.s32 0, %v217
    %v219 = vrot.slane %v211, %v218
    %v222 = vmul.f32 %v182, %v215
    %v223 = vmul.f32 %v183, %v219
    %v224 = vsel %vm32, %v222, 0.0
    %225 = vadd.xlane.f32.xlu0 %v224
    %v226 = vpop.xlane.xlu0 %225
    %v227 = vsel %vm32, %v223, 0.0
    %228 = vadd.xlane.f32.xlu0 %v227
    %v229 = vpop.xlane.xlu0 %228
    %v230 = vlaneseq
    %v231 = vand.u32 %v230, 127
    %232 = vset.pattern.permute.xlu0 0
    %233 = vperm.xlu0 %232, %v184
    %v234 = vpop.permute.xlu0 %233
    %vm235 = vcmp.lt.s32.totalorder %v231, %v234
    %v236 = vsel %vm235, 1, 0
    %v237 = vcvt.s32.f32 %v236
    %v240 = vlaneseq
    %v241 = vshrl.u32 %v240, 7
    %v242 = vsub.s32 %v231, %v241
    %v243 = vrot.slane %v226, %v242
    %v244 = vlaneseq
    %v245 = vshrl.u32 %v244, 7
    %v246 = vsub.s32 %v231, %v245
    %v247 = vrot.slane %v229, %v246
    %vm248 = vcmask 1041409
    %v249 = vsel %vm248, %v247, %v243
    %v251 = vmul.f32 %v237, %v249
    %vm252 = vcmp.eq.f32.partialorder %v251, 0.0
    %v253 = vsel %vm252, -1e+10, %v251
    %vm254 = vcmask 58368
    %v255 = vsel %vm254, %v253, -inf
    %256 = vmax.xlane.f32.xlu0 %v255
    %v257 = vpop.xlane.xlu0 %256
    %v258 = vsub.f32 %v253, %v257
    %v259 = vmul.f32 %v258, 1.442695
    %v260 = vpow.pop %v259
    %v261 = vsel %vm254, %v260, 0.0
    %262 = vadd.xlane.f32.xlu0 %v261
    %v263 = vpop.xlane.xlu0 %262
    %v264 = vrcp.pop %v263
    %v265 = vmul.f32 %v260, %v264
    %v266 = vlaneseq
    %v267 = vshrl.u32 %v266, 7
    %v268 = vsub.s32 0, %v267
    %v269 = vrot.slane %v265, %v268
    %271 = vbcast.lane.b32.xlu0 %v269, 256
    %v272 = vpop.permute.xlu0 %271
    %v273 = vlaneseq
    %v274 = vshrl.u32 %v273, 7
    %v275 = vsub.s32 1, %v274
    %v276 = vrot.slane %v265, %v275
    %278 = vbcast.lane.b32.xlu0 %v276, 256
    %v279 = vpop.permute.xlu0 %278
    %v280 = vmul.f32 %v272, %v182
    %v281 = vmul.f32 %v279, %v183
    %v282 = vsel %vm32, %v280, 0.0
    %v283 = vrot.slane %v282, 4
    %v284 = vadd.f32 %v282, %v283
    %v285 = vrot.slane %v284, 2
    %v286 = vadd.f32 %v284, %v285
    %v287 = vrot.slane %v286, 1
    %v288 = vadd.f32 %v286, %v287
    %v289 = vsel %vm32, %v281, 0.0
    %v290 = vrot.slane %v289, 4
    %v291 = vadd.f32 %v289, %v290
    %v292 = vrot.slane %v291, 2
    %v293 = vadd.f32 %v291, %v292
    %v294 = vrot.slane %v293, 1
    %v295 = vadd.f32 %v293, %v294
    %v298 = vsel %vm248, %v295, %v288
    %v299 = vsel %vm32, %v298, 0
    %301 = vmatprep.subr.mxu0 0.0
    %302 = vmatpush1.msra.mxu0 %v185
    %303 = vmatprep.subr.mxu0 0.0
    %304 = vmatpush1.msra.mxu0 %v186
    %305 = vmatprep.subr.mxu0 0.0
    %306 = vmatpush1.msra.mxu0 %v187
    %307 = vmatprep.subr.mxu0 0.0
    %308 = vmatpush1.msra.mxu0 %v188
    %309 = vmatprep.subr.mxu0 0.0
    %310 = vmatpush1.msra.mxu0 0.0
    %311 = vmatprep.subr.mxu0 0.0
    %312 = vmatpush1.msra.mxu0 0.0
    %313 = vmatprep.subr.mxu0 0.0
    %314 = vmatpush1.msra.mxu0 0.0
    %315 = vmatprep.subr.mxu0 0.0
    %316 = vmatpush1.msra.mxu0 0.0
    %317 = vmatprep.subr.mxu0 0.0
    %318 = vmatpush1.msra.mxu0 0.0
    %319 = vmatprep.subr.mxu0 0.0
    %320 = vmatpush1.msra.mxu0 0.0
    %321 = vmatprep.subr.mxu0 0.0
    %322 = vmatpush1.msra.mxu0 0.0
    %323 = vmatprep.subr.mxu0 0.0
    %324 = vmatpush1.msra.mxu0 0.0
    %325 = vmatprep.subr.mxu0 0.0
    %326 = vmatpush1.msra.mxu0 0.0
    %327 = vmatprep.subr.mxu0 0.0
    %328 = vmatpush1.msra.mxu0 0.0
    %329 = vmatprep.subr.mxu0 0.0
    %330 = vmatpush1.msra.mxu0 0.0
    %331 = vmatprep.subr.mxu0 0.0
    %332 = vmatpush1.msra.mxu0 0.0
    %333 = vmatprep.subr.mxu0 0.0
    %334 = vmatpush1.msra.mxu0 0.0
    %335 = vmatprep.subr.mxu0 0.0
    %336 = vmatpush1.msra.mxu0 0.0
    %337 = vmatprep.subr.mxu0 0.0
    %338 = vmatpush1.msra.mxu0 0.0
    %339 = vmatprep.subr.mxu0 0.0
    %340 = vmatpush1.msra.mxu0 0.0
    %341 = vmatprep.subr.mxu0 0.0
    %342 = vmatpush1.msra.mxu0 0.0
    %343 = vmatprep.subr.mxu0 0.0
    %344 = vmatpush1.msra.mxu0 0.0
    %345 = vmatprep.subr.mxu0 0.0
    %346 = vmatpush1.msra.mxu0 0.0
    %347 = vmatprep.subr.mxu0 0.0
    %348 = vmatpush1.msra.mxu0 0.0
    %349 = vmatprep.subr.mxu0 0.0
    %350 = vmatpush1.msra.mxu0 0.0
    %351 = vmatprep.subr.mxu0 0.0
    %352 = vmatpush1.msra.mxu0 0.0
    %353 = vmatprep.subr.mxu0 0.0
    %354 = vmatpush1.msra.mxu0 0.0
    %355 = vmatprep.subr.mxu0 0.0
    %356 = vmatpush1.msra.mxu0 0.0
    %357 = vmatprep.subr.mxu0 0.0
    %358 = vmatpush1.msra.mxu0 0.0
    %359 = vmatprep.subr.mxu0 0.0
    %360 = vmatpush1.msra.mxu0 0.0
    %361 = vmatprep.subr.mxu0 0.0
    %362 = vmatpush1.msra.mxu0 0.0
    %363 = vmatprep.subr.mxu0 0.0
    %364 = vmatpush1.msra.mxu0 0.0
    %365 = vmatprep.mubr.f32.mxu0 0.0
    %366 = vmatmul.mubr.f32.gmra.mrb[0].mxu0 %v299
    %v367 = vpop.f32.mrb[0].mxu0
    %v368 = vadd.f32 %v177, %v367
    %v369 = vpop.f32.mrb[0].mxu0
    %370 = vdwg.mxu0
    %v371 = vtanh.pop %v368
    %vm372 = vcmask 254976
    %373 = vst.msk [vmem:[#allocation2] sm:$0x3] %vm372, %v371
    %374 = vst.msk [vmem:[#allocation4] sm:$0x3] %vm254, %v265
    // Predicated region
    $region26: #{attention_module.1} parent=1 // pred_check
      _
    $region27: #{attention_module.1} parent=1 // pred_check_branch
      %376 = sbr.rel (0) target = $region29
    $region28: #{attention_module.1} parent=1 // pred_region
      %s378 = ssub.s32 32, 32
      %379 = vsyncadd [#allocation3], %s378
      %s381 = sshll.u32 [#allocation2], 4
      %s382 = int_to_ptr.vmem [resolvable:$true] %s381
      %384 = dma.vmem_to_hbm [thread:$0]  %s382, 32, %s6, [#allocation3]
    $region29: #{attention_module.1} parent=1 // pred_fallthru
      _
    // Predicated region
    $region30: #{attention_module.1} parent=1 // pred_check
      _
    $region31: #{attention_module.1} parent=1 // pred_check_branch
      %386 = sbr.rel (0) target = $region33
    $region32: #{attention_module.1} parent=1 // pred_region
      %s388 = ssub.s32 32, 32
      %389 = vsyncadd [#allocation5], %s388
      %s391 = sshll.u32 [#allocation4], 4
      %s392 = int_to_ptr.vmem [resolvable:$true] %s391
      %394 = dma.vmem_to_hbm [thread:$0]  %s392, 32, %s7, [#allocation5]
    $region33: #{attention_module.1} parent=1 // pred_fallthru
      _
    // Predicated region
    $region34: #{attention_module.1} parent=1 // pred_check
      _
    $region35: #{attention_module.1} parent=1 // pred_check_branch
      %396 = sbr.rel (0) target = $region37
    $region36: #{attention_module.1} parent=1 // pred_region
      %397 = dma.done [#allocation3], 32
    $region37: #{attention_module.1} parent=1 // pred_fallthru
      _
    // Predicated region
    $region38: #{attention_module.1} parent=1 // pred_check
      _
    $region39: #{attention_module.1} parent=1 // pred_check_branch
      %399 = sbr.rel (0) target = $region41
    $region40: #{attention_module.1} parent=1 // pred_region
      %400 = dma.done [#allocation5], 32
    $region41: #{attention_module.1} parent=1 // pred_fallthru
      _
    %401 = vsyncpa [#allocation3], 1
    %402 = vsyncpa [#allocation5], 1

</llo_original>
